<compile_context>
chip_gen: v7x
topology: tpu7x:2x2x1
jax: 0.10.0
libtpu: 0.0.40
codegen_flags: <defaults>
</compile_context>

<pallas_src>
import itertools
from functools import partial
from typing import NamedTuple, List, Tuple

import numpy as np
import jax
import jax.numpy as jnp
from jax.experimental import pallas as pl
from jax.experimental.pallas import tpu as pltpu

try:  # prefer the real Hungarian solver when present
    from scipy.optimize import linear_sum_assignment as _scipy_lsa
except Exception:  # pragma: no cover
    _scipy_lsa = None


def _round_up(x: int, m: int) -> int:
    return ((x + m - 1) // m) * m


def _bf16_box_math_supported() -> bool:
    """bf16 VALU exists on v6e / v7x; keep f32 elementwise math on v5e & older."""
    try:
        kind = jax.devices()[0].device_kind.lower()
    except Exception:
        return False
    return ("v6" in kind) or ("v7" in kind)


# ---------------------------------------------------------------------------
# Pallas kernel: fused DETR matching-cost matrix (per-batch block)
# ---------------------------------------------------------------------------
def _make_cost_kernel(w_class: float, w_bbox: float, w_giou: float,
                      use_bf16_box: bool, eps: float = 1e-7):
    box_dt = jnp.bfloat16 if use_bf16_box else jnp.float32

    def kernel(logits_ref, onehot_ref, qbox_ref, tbox_ref, out_ref):
        # ---- classification cost --------------------------------------------------
        # gather sigmoid(logits)[:, tgt_cls] as sigmoid(logits @ onehot):
        # bf16 operands on the MXU, f32 accumulation, sigmoid fused after the gather.
        sel = jnp.dot(logits_ref[...], onehot_ref[...],
                      preferred_element_type=jnp.float32)            # [TN, Mp] f32
        # sigmoid via a single EUP tanh push (instead of exp + reciprocal)
        sig = 0.5 * jnp.tanh(0.5 * sel) + 0.5

        # ---- box costs (bf16 elementwise on v6e/v7x, f32 on v5e) -------------------
        qbox = qbox_ref[...].astype(box_dt)                          # [TN, 4]
        tbox = tbox_ref[...].astype(box_dt)                          # [4, Mp]
        qcx = qbox[:, 0:1]; qcy = qbox[:, 1:2]; qw = qbox[:, 2:3]; qh = qbox[:, 3:4]
        tcx = tbox[0:1, :]; tcy = tbox[1:2, :]; tw = tbox[2:3, :]; th = tbox[3:4, :]

        # cost_bbox = torch.cdist(out_bbox, tgt_bbox, p=1)
        cost_bbox = (jnp.abs(qcx - tcx) + jnp.abs(qcy - tcy)
                     + jnp.abs(qw - tw) + jnp.abs(qh - th))          # [TN, Mp]

        # box_cxcywh_to_xyxy (query-side terms are [TN, 1], target-side [1, Mp])
        qx1 = qcx - 0.5 * qw; qy1 = qcy - 0.5 * qh
        qx2 = qcx + 0.5 * qw; qy2 = qcy + 0.5 * qh
        tx1 = tcx - 0.5 * tw; ty1 = tcy - 0.5 * th
        tx2 = tcx + 0.5 * tw; ty2 = tcy + 0.5 * th
        area_q = (qx2 - qx1) * (qy2 - qy1)                           # [TN, 1]
        area_t = (tx2 - tx1) * (ty2 - ty1)                           # [1, Mp]

        inter = (jnp.maximum(jnp.minimum(qx2, tx2) - jnp.maximum(qx1, tx1), 0.0)
                 * jnp.maximum(jnp.minimum(qy2, ty2) - jnp.maximum(qy1, ty1), 0.0))
        union = area_q + area_t - inter
        enc = ((jnp.maximum(qx2, tx2) - jnp.minimum(qx1, tx1))
               * (jnp.maximum(qy2, ty2) - jnp.minimum(qy1, ty1)))

        # divides -> EUP approx reciprocals (+ eps to avoid NaN for degenerate boxes)
        inter_f = inter.astype(jnp.float32)
        union_f = union.astype(jnp.float32)
        enc_f = enc.astype(jnp.float32)
        iou = inter_f * pl.reciprocal(union_f + eps, approx=True)
        giou = iou - (enc_f - union_f) * pl.reciprocal(enc_f + eps, approx=True)

        # single combined expression, out_ref written exactly once
        out_ref[...] = (w_bbox * cost_bbox.astype(jnp.float32)
                        - w_class * sig
                        - w_giou * giou).astype(out_ref.dtype)
    return kernel


@partial(jax.jit,
         static_argnames=("w_class", "w_bbox", "w_giou", "tile_n", "use_bf16_box"))
def _cost_matrix_pallas(logits, onehot, qbox, tbox, *, w_class, w_bbox, w_giou,
                        tile_n, use_bf16_box):
    """logits: [bs, Nq_pad, Cp] bf16, onehot: [bs, Cp, Mp] bf16,
    qbox: [bs, Nq_pad, 4] f32, tbox: [bs, 4, Mp] f32 -> cost [bs, Nq_pad, Mp] f32."""
    bs, nq, c_pad = logits.shape
    mp = onehot.shape[-1]
    n_qtiles = nq // tile_n

    kernel = _make_cost_kernel(float(w_class), float(w_bbox), float(w_giou),
                               bool(use_bf16_box))

    # Per-step (double-buffered) working set; cap well below v7x's 64 MiB VMEM.
    blk_bytes = 2 * (tile_n * c_pad * 2 + c_pad * mp * 2
                     + tile_n * 4 * 4 + 4 * mp * 4 + tile_n * mp * 4)
    vmem_limit = int(min(max(3 * blk_bytes, 16 * 2**20), 32 * 2**20))

    flops = 2 * bs * nq * c_pad * mp + 35 * bs * nq * mp
    bytes_accessed = (logits.size * 2 + onehot.size * 2
                      + qbox.size * 4 + tbox.size * 4 + bs * nq * mp * 4)

    return pl.pallas_call(
        kernel,
        out_shape=jax.ShapeDtypeStruct((bs, nq, mp), jnp.float32),
        grid=(bs, n_qtiles),
        in_specs=[
            pl.BlockSpec((None, tile_n, c_pad), lambda b, i: (b, i, 0)),  # logits
            pl.BlockSpec((None, c_pad, mp),     lambda b, i: (b, 0, 0)),  # one-hot (resident per b)
            pl.BlockSpec((None, tile_n, 4),     lambda b, i: (b, i, 0)),  # query boxes
            pl.BlockSpec((None, 4, mp),         lambda b, i: (b, 0, 0)),  # target boxes (resident per b)
        ],
        out_specs=pl.BlockSpec((None, tile_n, mp), lambda b, i: (b, i, 0)),
        compiler_params=pltpu.CompilerParams(
            dimension_semantics=("parallel", "parallel"),
            vmem_limit_bytes=vmem_limit,
        ),
        cost_estimate=pl.CostEstimate(flops=flops,
                                      transcendentals=3 * bs * nq * mp,
                                      bytes_accessed=bytes_accessed),
    )(logits, onehot, qbox, tbox)


# ---------------------------------------------------------------------------
# Host-side glue (sequential / data-dependent parts stay on host)
# ---------------------------------------------------------------------------
def _linear_sum_assignment(cost: np.ndarray):
    n_rows, n_cols = cost.shape
    if n_cols == 0 or n_rows == 0:
        return np.empty([0], dtype=np.int64), np.empty([0], dtype=np.int64)
    if _scipy_lsa is not None:
        r, c = _scipy_lsa(cost)
        return np.asarray(r, dtype=np.int64), np.asarray(c, dtype=np.int64)
    # TODO(synk): Hungarian assignment is sequential/data-dependent with no Pallas
    # equivalent; brute-force fallback only valid for small toy sizes.
    assert n_rows >= n_cols, "brute-force fallback expects num_queries >= num_targets"
    best_rows, best_val = None, np.inf
    for rows in itertools.permutations(range(n_rows), n_cols):
        val = cost[list(rows), list(range(n_cols))].sum()
        if val < best_val:
            best_val, best_rows = val, rows
    pairs = sorted(zip(best_rows, range(n_cols)))
    rows = np.array([p[0] for p in pairs], dtype=np.int64)
    cols = np.array([p[1] for p in pairs], dtype=np.int64)
    return rows, cols


class BatchedOutputs(NamedTuple):
    detection_logits: jnp.ndarray    # [bs, num_queries, num_classes]
    detection_boxes: jnp.ndarray     # [bs, num_queries, 4]  (cx, cy, w, h)
    batch_size: int
    num_detect_queries: int
    iter_index: int
    has_track_queries: bool = False
    track_gt_maps: tuple = ()


class GroundTruth(NamedTuple):
    annotations: list        # per-frame arrays [n_obj, 7]: [label, id, cx, cy, w, h, area]
    num_objects: list
    num_frames: int

    def get_annotations(self, idx):
        return self.annotations[idx]


class HungarianMatcher:
    def __init__(self, cost_class: float = 1, cost_bbox: float = 1, cost_giou: float = 1):
        assert cost_class != 0 or cost_bbox != 0 or cost_giou != 0, "all costs cant be 0"
        self.cost_class = cost_class
        self.cost_bbox = cost_bbox
        self.cost_giou = cost_giou

    def forward(self, outputs: BatchedOutputs, targets: List[GroundTruth],
                invalid_target_indices=None):
        bs, num_queries = outputs.batch_size, outputs.num_detect_queries
        current_index = outputs.iter_index + targets[0].num_frames - 1
        if invalid_target_indices is not None:
            assert len(invalid_target_indices) == len(targets)

        num_classes = outputs.detection_logits.shape[-1]
        annos_list = [np.asarray(jax.device_get(t.get_annotations(current_index)))
                      for t in targets]
        sizes = [int(t.num_objects[current_index]) for t in targets]

        # ---- padded, lane-dense shapes ---------------------------------------------
        mp = _round_up(max(max(sizes), 1), 128)          # targets padded to x128
        c_pad = _round_up(num_classes, 128)              # MXU-K / lane aligned classes
        # Query tiling: one tile per batch element (minimal padding); use two tiles
        # when bs is odd/1 so the (bs, n_qtiles) "parallel" grid stays even for the
        # two TensorCores on v7x (harmless ~0.35us extra step on v5e/v6e).
        n_qtiles = 1 if (bs % 2 == 0) or (num_queries < 16) else 2
        tile_n = _round_up(-(-num_queries // n_qtiles), 8)
        nq_pad = tile_n * n_qtiles

        # ---- per-batch padded target tensors (one-hot built directly in bf16) -----
        try:
            onehot = np.zeros((bs, c_pad, mp), dtype=np.dtype(jnp.bfloat16))
        except TypeError:  # pragma: no cover - very old numpy/ml_dtypes
            onehot = np.zeros((bs, c_pad, mp), dtype=np.float32)
        tbox = np.tile(np.array([0.5, 0.5, 1.0, 1.0], np.float32).reshape(1, 4, 1),
                       (bs, 1, mp))                      # safe dummy boxes
        tgt_ids_list = []
        for b in range(bs):
            m = sizes[b]
            a = annos_list[b]
            tgt_ids_list.append(a[:m, 1].astype(np.int64))
            if m:
                onehot[b, a[:m, 0].astype(np.int64), np.arange(m)] = 1.0
                tbox[b, :, :m] = a[:m, 2:6].T

        logits = outputs.detection_logits.astype(jnp.bfloat16)   # raw logits (sigmoid in-kernel)
        qbox = outputs.detection_boxes.astype(jnp.float32)
        pad_q = nq_pad - num_queries
        pad_c = c_pad - num_classes
        if pad_q or pad_c:
            logits = jnp.pad(logits, ((0, 0), (0, pad_q), (0, pad_c)))
        if pad_q:
            safe = jnp.broadcast_to(jnp.asarray([0.5, 0.5, 1.0, 1.0], jnp.float32),
                                    (bs, pad_q, 4))
            qbox = jnp.concatenate([qbox, safe], axis=1)

        # ---- hot path: fused Pallas cost-matrix kernel ----------------------------
        C = _cost_matrix_pallas(
            logits, jnp.asarray(onehot, jnp.bfloat16), qbox,
            jnp.asarray(tbox, jnp.float32),
            w_class=float(self.cost_class), w_bbox=float(self.cost_bbox),
            w_giou=float(self.cost_giou), tile_n=int(tile_n),
            use_bf16_box=_bf16_box_math_supported())
        C = np.asarray(jax.block_until_ready(C))                  # [bs, nq_pad, mp]

        # ---- host-side assignment per batch ----------------------------------------
        idx_pairs: List[Tuple[np.ndarray, np.ndarray, np.ndarray]] = []
        for index in range(bs):
            m = sizes[index]
            cost = C[index, :num_queries, :m].copy()
            frame_target_ids = tgt_ids_list[index]
            if invalid_target_indices is not None:
                inv = np.asarray(invalid_target_indices[index]).astype(np.int64)
                # TODO(synk): torch.randint(2000, 3000) placeholder replaced by a
                # deterministic large value; same effect (excluded by the <1000 mask).
                if inv.size:
                    cost[:, inv] = 2500.0
            if np.isnan(cost).any():
                print("warning: cost contains nan at index: {}".format(index))
                cost = np.nan_to_num(cost, nan=10000.0)
            hs_indices, gt_indices = _linear_sum_assignment(cost)
            if hs_indices.size:
                mask = cost[hs_indices, gt_indices] < 1000.0
            else:
                mask = np.zeros([0], dtype=bool)
            hs_indices, gt_indices = hs_indices[mask], gt_indices[mask]
            idx_pairs.append((hs_indices, gt_indices, frame_target_ids[gt_indices]))
        return idx_pairs


class Matcher:
    """Match all queries (track queries and detect queries)."""

    def __init__(self, cost_class: float = 1, cost_bbox: float = 1, cost_giou: float = 1):
        self.detect_matcher = HungarianMatcher(cost_class, cost_bbox, cost_giou)
        self.prev_match_results = None

    @staticmethod
    def _get_tracks_matched_gt_indices(matched_ids, gt_annos):
        matched_ids = np.asarray(matched_ids).astype(np.int64)
        gt_annos = np.asarray(gt_annos)
        if gt_annos.size == 0:
            return (np.empty([0], dtype=np.int64),
                    np.zeros_like(matched_ids, dtype=bool))
        current_ids = gt_annos[:, 1].astype(np.int64)
        max_gt_id = max(int(current_ids.max()),
                        int(matched_ids.max()) if matched_ids.size else 0)
        id_map = np.full([max_gt_id + 1], -1, dtype=np.int64)
        id_map[current_ids] = np.arange(len(current_ids), dtype=np.int64)
        indices = id_map[matched_ids]
        keep = (indices >= 0) & (indices < len(gt_annos))
        return indices[keep], keep

    def forward(self, outputs: BatchedOutputs, targets: List[GroundTruth]):
        current_index = outputs.iter_index + targets[0].num_frames - 1
        track_pairs = []
        invalid_gt_indices = []
        for batch_idx in range(outputs.batch_size):
            if outputs.has_track_queries:
                hs_indices, _, gt_ids, _ = outputs.track_gt_maps[batch_idx]
                annos = targets[batch_idx].get_annotations(current_index)
                existing_gt_indices, keep = self._get_tracks_matched_gt_indices(gt_ids, annos)
                track_pairs.append((hs_indices, existing_gt_indices, gt_ids, keep))
                invalid_gt_indices.append(existing_gt_indices)
            else:
                invalid_gt_indices = None
                track_pairs = None
        detect_pairs = self.detect_matcher.forward(outputs, targets, invalid_gt_indices)
        return detect_pairs, track_pairs


# ---------------------------------------------------------------------------
# Example run
# ---------------------------------------------------------------------------
if __name__ == "__main__":
    key = jax.random.PRNGKey(0)
    bs, num_queries, num_classes = 2, 8, 5

    k1, k2, k3 = jax.random.split(key, 3)
    logits = jax.random.normal(k1, (bs, num_queries, num_classes), dtype=jnp.float32)
    centers = jax.random.uniform(k2, (bs, num_queries, 2), minval=0.2, maxval=0.8)
    whs = jax.random.uniform(k3, (bs, num_queries, 2), minval=0.05, maxval=0.3)
    boxes = jnp.concatenate([centers, whs], axis=-1).astype(jnp.float32)  # cxcywh

    sizes = [3, 5]  # objects per batch element
    targets = []
    kk = jax.random.PRNGKey(42)
    for b, n_obj in enumerate(sizes):
        kk, ka, kb, kc = jax.random.split(kk, 4)
        labels = jax.random.randint(ka, (n_obj, 1), 0, num_classes).astype(jnp.float32)
        ids = jnp.arange(100 * (b + 1), 100 * (b + 1) + n_obj, dtype=jnp.float32)[:, None]
        tc = jax.random.uniform(kb, (n_obj, 2), minval=0.2, maxval=0.8)
        twh = jax.random.uniform(kc, (n_obj, 2), minval=0.05, maxval=0.3)
        area = twh[:, 0:1] * twh[:, 1:2]
        annos = jnp.concatenate([labels, ids, tc, twh, area], axis=-1)  # [n_obj, 7]
        targets.append(GroundTruth(annotations=[annos], num_objects=[n_obj], num_frames=1))

    outputs = BatchedOutputs(detection_logits=logits, detection_boxes=boxes,
                             batch_size=bs, num_detect_queries=num_queries,
                             iter_index=0, has_track_queries=False)

    matcher = Matcher(cost_class=1.0, cost_bbox=1.0, cost_giou=1.0)
    detect_pairs, track_pairs = matcher.forward(outputs, targets)

    # sanity checks: one match per ground-truth object
    for b, (hs, gt, ids_b) in enumerate(detect_pairs):
        assert len(hs) == len(gt) == len(ids_b) == min(num_queries, sizes[b])
    assert track_pairs is None

    print("KERNEL_OK")
</pallas_src>

<mosaic_0001>
module attributes {stable_mosaic.version = 11 : i64} {
  func.func @kernel(%arg0: i32, %arg1: i32, %arg2: memref<1x8x128xbf16, #tpu.memory_space<vmem>>, %arg3: memref<1x128x128xbf16, #tpu.memory_space<vmem>>, %arg4: memref<1x8x4xf32, #tpu.memory_space<vmem>>, %arg5: memref<1x4x128xf32, #tpu.memory_space<vmem>>, %arg6: memref<1x8x128xf32, #tpu.memory_space<vmem>>) attributes {dimension_semantics = [#tpu.dimension_semantics<parallel>, #tpu.dimension_semantics<parallel>], iteration_bounds = array<i64: 2, 1>, scalar_prefetch = 0 : i64, scratch_operands = 0 : i64, tpu.core_type = #tpu.core_type<tc>, window_params = [{transform_indices = @transform_0, window_bounds = array<i64: 1, 8, 128>}, {transform_indices = @transform_1, window_bounds = array<i64: 1, 128, 128>}, {transform_indices = @transform_2, window_bounds = array<i64: 1, 8, 4>}, {transform_indices = @transform_3, window_bounds = array<i64: 1, 4, 128>}, {transform_indices = @transform_4, window_bounds = array<i64: 1, 8, 128>}]} {
    %c0 = arith.constant 0 : index
    %c0_0 = arith.constant 0 : index
    %c0_1 = arith.constant 0 : index
    %0 = vector.load %arg2[%c0, %c0_0, %c0_1] : memref<1x8x128xbf16, #tpu.memory_space<vmem>>, vector<1x8x128xbf16>
    %1 = vector.shape_cast %0 : vector<1x8x128xbf16> to vector<8x128xbf16>
    %c0_2 = arith.constant 0 : index
    %c0_3 = arith.constant 0 : index
    %c0_4 = arith.constant 0 : index
    %2 = vector.load %arg3[%c0_2, %c0_3, %c0_4] : memref<1x128x128xbf16, #tpu.memory_space<vmem>>, vector<1x128x128xbf16>
    %3 = vector.shape_cast %2 : vector<1x128x128xbf16> to vector<128x128xbf16>
    %cst = arith.constant dense<0.000000e+00> : vector<8x128xf32>
    %4 = tpu.matmul %1, %3, %cst {dimension_numbers = #tpu.dot_dimension_numbers<[1], [0], [0], [1], [0, 0, 1, 1], [], []>} : vector<8x128xbf16>, vector<128x128xbf16>, vector<8x128xf32> -> vector<8x128xf32>
    %cst_5 = arith.constant 5.000000e-01 : f32
    %5 = vector.broadcast %cst_5 : f32 to vector<8x128xf32>
    %6 = arith.mulf %5, %4 : vector<8x128xf32>
    %7 = math.tanh %6 : vector<8x128xf32>
    %cst_6 = arith.constant 5.000000e-01 : f32
    %8 = vector.broadcast %cst_6 : f32 to vector<8x128xf32>
    %9 = arith.mulf %8, %7 : vector<8x128xf32>
    %cst_7 = arith.constant 5.000000e-01 : f32
    %10 = vector.broadcast %cst_7 : f32 to vector<8x128xf32>
    %11 = arith.addf %9, %10 : vector<8x128xf32>
    %c0_8 = arith.constant 0 : index
    %c0_9 = arith.constant 0 : index
    %c0_10 = arith.constant 0 : index
    %12 = vector.load %arg4[%c0_8, %c0_9, %c0_10] : memref<1x8x4xf32, #tpu.memory_space<vmem>>, vector<1x8x4xf32>
    %13 = vector.shape_cast %12 : vector<1x8x4xf32> to vector<8x4xf32>
    %c0_11 = arith.constant 0 : index
    %c0_12 = arith.constant 0 : index
    %c0_13 = arith.constant 0 : index
    %14 = vector.load %arg5[%c0_11, %c0_12, %c0_13] : memref<1x4x128xf32, #tpu.memory_space<vmem>>, vector<1x4x128xf32>
    %15 = vector.shape_cast %14 : vector<1x4x128xf32> to vector<4x128xf32>
    %16 = vector.extract_strided_slice %13 {offsets = [0, 0], sizes = [8, 1], strides = [1, 1]} : vector<8x4xf32> to vector<8x1xf32>
    %17 = vector.extract_strided_slice %13 {offsets = [0, 1], sizes = [8, 1], strides = [1, 1]} : vector<8x4xf32> to vector<8x1xf32>
    %18 = vector.extract_strided_slice %13 {offsets = [0, 2], sizes = [8, 1], strides = [1, 1]} : vector<8x4xf32> to vector<8x1xf32>
    %19 = vector.extract_strided_slice %13 {offsets = [0, 3], sizes = [8, 1], strides = [1, 1]} : vector<8x4xf32> to vector<8x1xf32>
    %20 = vector.extract_strided_slice %15 {offsets = [0, 0], sizes = [1, 128], strides = [1, 1]} : vector<4x128xf32> to vector<1x128xf32>
    %21 = vector.extract_strided_slice %15 {offsets = [1, 0], sizes = [1, 128], strides = [1, 1]} : vector<4x128xf32> to vector<1x128xf32>
    %22 = vector.extract_strided_slice %15 {offsets = [2, 0], sizes = [1, 128], strides = [1, 1]} : vector<4x128xf32> to vector<1x128xf32>
    %23 = vector.extract_strided_slice %15 {offsets = [3, 0], sizes = [1, 128], strides = [1, 1]} : vector<4x128xf32> to vector<1x128xf32>
    %24 = vector.broadcast %16 : vector<8x1xf32> to vector<8x128xf32>
    %25 = vector.broadcast %20 : vector<1x128xf32> to vector<8x128xf32>
    %26 = arith.subf %24, %25 : vector<8x128xf32>
    %27 = math.absf %26 : vector<8x128xf32>
    %28 = vector.broadcast %17 : vector<8x1xf32> to vector<8x128xf32>
    %29 = vector.broadcast %21 : vector<1x128xf32> to vector<8x128xf32>
    %30 = arith.subf %28, %29 : vector<8x128xf32>
    %31 = math.absf %30 : vector<8x128xf32>
    %32 = arith.addf %27, %31 : vector<8x128xf32>
    %33 = vector.broadcast %18 : vector<8x1xf32> to vector<8x128xf32>
    %34 = vector.broadcast %22 : vector<1x128xf32> to vector<8x128xf32>
    %35 = arith.subf %33, %34 : vector<8x128xf32>
    %36 = math.absf %35 : vector<8x128xf32>
    %37 = arith.addf %32, %36 : vector<8x128xf32>
    %38 = vector.broadcast %19 : vector<8x1xf32> to vector<8x128xf32>
    %39 = vector.broadcast %23 : vector<1x128xf32> to vector<8x128xf32>
    %40 = arith.subf %38, %39 : vector<8x128xf32>
    %41 = math.absf %40 : vector<8x128xf32>
    %42 = arith.addf %37, %41 : vector<8x128xf32>
    %cst_14 = arith.constant 5.000000e-01 : f32
    %43 = vector.broadcast %cst_14 : f32 to vector<8x1xf32>
    %44 = arith.mulf %43, %18 : vector<8x1xf32>
    %45 = arith.subf %16, %44 : vector<8x1xf32>
    %cst_15 = arith.constant 5.000000e-01 : f32
    %46 = vector.broadcast %cst_15 : f32 to vector<8x1xf32>
    %47 = arith.mulf %46, %19 : vector<8x1xf32>
    %48 = arith.subf %17, %47 : vector<8x1xf32>
    %cst_16 = arith.constant 5.000000e-01 : f32
    %49 = vector.broadcast %cst_16 : f32 to vector<8x1xf32>
    %50 = arith.mulf %49, %18 : vector<8x1xf32>
    %51 = arith.addf %16, %50 : vector<8x1xf32>
    %cst_17 = arith.constant 5.000000e-01 : f32
    %52 = vector.broadcast %cst_17 : f32 to vector<8x1xf32>
    %53 = arith.mulf %52, %19 : vector<8x1xf32>
    %54 = arith.addf %17, %53 : vector<8x1xf32>
    %cst_18 = arith.constant 5.000000e-01 : f32
    %55 = vector.broadcast %cst_18 : f32 to vector<1x128xf32>
    %56 = arith.mulf %55, %22 : vector<1x128xf32>
    %57 = arith.subf %20, %56 : vector<1x128xf32>
    %cst_19 = arith.constant 5.000000e-01 : f32
    %58 = vector.broadcast %cst_19 : f32 to vector<1x128xf32>
    %59 = arith.mulf %58, %23 : vector<1x128xf32>
    %60 = arith.subf %21, %59 : vector<1x128xf32>
    %cst_20 = arith.constant 5.000000e-01 : f32
    %61 = vector.broadcast %cst_20 : f32 to vector<1x128xf32>
    %62 = arith.mulf %61, %22 : vector<1x128xf32>
    %63 = arith.addf %20, %62 : vector<1x128xf32>
    %cst_21 = arith.constant 5.000000e-01 : f32
    %64 = vector.broadcast %cst_21 : f32 to vector<1x128xf32>
    %65 = arith.mulf %64, %23 : vector<1x128xf32>
    %66 = arith.addf %21, %65 : vector<1x128xf32>
    %67 = arith.subf %51, %45 : vector<8x1xf32>
    %68 = arith.subf %54, %48 : vector<8x1xf32>
    %69 = arith.mulf %67, %68 : vector<8x1xf32>
    %70 = arith.subf %63, %57 : vector<1x128xf32>
    %71 = arith.subf %66, %60 : vector<1x128xf32>
    %72 = arith.mulf %70, %71 : vector<1x128xf32>
    %73 = vector.broadcast %51 : vector<8x1xf32> to vector<8x128xf32>
    %74 = vector.broadcast %63 : vector<1x128xf32> to vector<8x128xf32>
    %75 = arith.minimumf %73, %74 : vector<8x128xf32>
    %76 = vector.broadcast %45 : vector<8x1xf32> to vector<8x128xf32>
    %77 = vector.broadcast %57 : vector<1x128xf32> to vector<8x128xf32>
    %78 = arith.maximumf %76, %77 : vector<8x128xf32>
    %79 = arith.subf %75, %78 : vector<8x128xf32>
    %cst_22 = arith.constant 0.000000e+00 : f32
    %80 = vector.broadcast %cst_22 : f32 to vector<8x128xf32>
    %81 = arith.maximumf %79, %80 : vector<8x128xf32>
    %82 = vector.broadcast %54 : vector<8x1xf32> to vector<8x128xf32>
    %83 = vector.broadcast %66 : vector<1x128xf32> to vector<8x128xf32>
    %84 = arith.minimumf %82, %83 : vector<8x128xf32>
    %85 = vector.broadcast %48 : vector<8x1xf32> to vector<8x128xf32>
    %86 = vector.broadcast %60 : vector<1x128xf32> to vector<8x128xf32>
    %87 = arith.maximumf %85, %86 : vector<8x128xf32>
    %88 = arith.subf %84, %87 : vector<8x128xf32>
    %cst_23 = arith.constant 0.000000e+00 : f32
    %89 = vector.broadcast %cst_23 : f32 to vector<8x128xf32>
    %90 = arith.maximumf %88, %89 : vector<8x128xf32>
    %91 = arith.mulf %81, %90 : vector<8x128xf32>
    %92 = vector.broadcast %69 : vector<8x1xf32> to vector<8x128xf32>
    %93 = vector.broadcast %72 : vector<1x128xf32> to vector<8x128xf32>
    %94 = arith.addf %92, %93 : vector<8x128xf32>
    %95 = arith.subf %94, %91 : vector<8x128xf32>
    %96 = vector.broadcast %51 : vector<8x1xf32> to vector<8x128xf32>
    %97 = vector.broadcast %63 : vector<1x128xf32> to vector<8x128xf32>
    %98 = arith.maximumf %96, %97 : vector<8x128xf32>
    %99 = vector.broadcast %45 : vector<8x1xf32> to vector<8x128xf32>
    %100 = vector.broadcast %57 : vector<1x128xf32> to vector<8x128xf32>
    %101 = arith.minimumf %99, %100 : vector<8x128xf32>
    %102 = arith.subf %98, %101 : vector<8x128xf32>
    %103 = vector.broadcast %54 : vector<8x1xf32> to vector<8x128xf32>
    %104 = vector.broadcast %66 : vector<1x128xf32> to vector<8x128xf32>
    %105 = arith.maximumf %103, %104 : vector<8x128xf32>
    %106 = vector.broadcast %48 : vector<8x1xf32> to vector<8x128xf32>
    %107 = vector.broadcast %60 : vector<1x128xf32> to vector<8x128xf32>
    %108 = arith.minimumf %106, %107 : vector<8x128xf32>
    %109 = arith.subf %105, %108 : vector<8x128xf32>
    %110 = arith.mulf %102, %109 : vector<8x128xf32>
    %cst_24 = arith.constant 1.000000e-07 : f32
    %111 = vector.broadcast %cst_24 : f32 to vector<8x128xf32>
    %112 = arith.addf %95, %111 : vector<8x128xf32>
    %113 = tpu.reciprocal %112 {approx = true} : vector<8x128xf32> -> vector<8x128xf32>
    %114 = arith.mulf %91, %113 : vector<8x128xf32>
    %115 = arith.subf %110, %95 : vector<8x128xf32>
    %cst_25 = arith.constant 1.000000e-07 : f32
    %116 = vector.broadcast %cst_25 : f32 to vector<8x128xf32>
    %117 = arith.addf %110, %116 : vector<8x128xf32>
    %118 = tpu.reciprocal %117 {approx = true} : vector<8x128xf32> -> vector<8x128xf32>
    %119 = arith.mulf %115, %118 : vector<8x128xf32>
    %120 = arith.subf %114, %119 : vector<8x128xf32>
    %cst_26 = arith.constant 1.000000e+00 : f32
    %121 = vector.broadcast %cst_26 : f32 to vector<8x128xf32>
    %122 = arith.mulf %121, %42 : vector<8x128xf32>
    %cst_27 = arith.constant 1.000000e+00 : f32
    %123 = vector.broadcast %cst_27 : f32 to vector<8x128xf32>
    %124 = arith.mulf %123, %11 : vector<8x128xf32>
    %125 = arith.subf %122, %124 : vector<8x128xf32>
    %cst_28 = arith.constant 1.000000e+00 : f32
    %126 = vector.broadcast %cst_28 : f32 to vector<8x128xf32>
    %127 = arith.mulf %126, %120 : vector<8x128xf32>
    %128 = arith.subf %125, %127 : vector<8x128xf32>
    %c0_29 = arith.constant 0 : index
    %c0_30 = arith.constant 0 : index
    %c0_31 = arith.constant 0 : index
    %129 = vector.load %arg6[%c0_29, %c0_30, %c0_31] : memref<1x8x128xf32, #tpu.memory_space<vmem>>, vector<1x8x128xf32>
    %130 = vector.shape_cast %129 : vector<1x8x128xf32> to vector<8x128xf32>
    %131 = vector.shape_cast %128 : vector<8x128xf32> to vector<1x8x128xf32>
    tpu.vector_store %arg6[%c0_29, %c0_30, %c0_31], %131 {strides = array<i32>} : memref<1x8x128xf32, #tpu.memory_space<vmem>>, vector<1x8x128xf32>,
    return
  }
  func.func @transform_0(%arg0: i32, %arg1: i32) -> (i32, i32, i32) {
    %c0_i32 = arith.constant 0 : i32
    %c0_i32_0 = arith.constant 0 : i32
    return %arg0, %arg1, %c0_i32 : i32, i32, i32
  }
  func.func @transform_1(%arg0: i32, %arg1: i32) -> (i32, i32, i32) {
    %c0_i32 = arith.constant 0 : i32
    %c0_i32_0 = arith.constant 0 : i32
    %c0_i32_1 = arith.constant 0 : i32
    return %arg0, %c0_i32, %c0_i32_0 : i32, i32, i32
  }
  func.func @transform_2(%arg0: i32, %arg1: i32) -> (i32, i32, i32) {
    %c0_i32 = arith.constant 0 : i32
    %c0_i32_0 = arith.constant 0 : i32
    return %arg0, %arg1, %c0_i32 : i32, i32, i32
  }
  func.func @transform_3(%arg0: i32, %arg1: i32) -> (i32, i32, i32) {
    %c0_i32 = arith.constant 0 : i32
    %c0_i32_0 = arith.constant 0 : i32
    %c0_i32_1 = arith.constant 0 : i32
    return %arg0, %c0_i32, %c0_i32_0 : i32, i32, i32
  }
  func.func @transform_4(%arg0: i32, %arg1: i32) -> (i32, i32, i32) {
    %c0_i32 = arith.constant 0 : i32
    %c0_i32_0 = arith.constant 0 : i32
    return %arg0, %arg1, %c0_i32 : i32, i32, i32
  }
}

</mosaic_0001>

<llo_original>
// kernel: _cost_matrix_pallas.1
$region0: #{_cost_matrix_pallas.1}
  #allocation0 [shape = 'u32[]', space=smem, size = 0x4, offset = 0x4, fixed_abs, tag = 'smem constant byte address 0x4 - core index']
  #allocation1 [shape = 'u32[144,128]{1,0:T(1,128)}', space=vmem, size = 0x12000, scoped, tag = 'internal scratch']
  %s0 = inlined_call_operand.vmem [shape: bf16[2,8,128], index: 0, kind: input, shape index: {}]
  %s1 = inlined_call_operand.hbm [shape: bf16[2,128,128], index: 1, kind: input, shape index: {}]
  %s2 = inlined_call_operand.vmem [shape: f32[2,8,4], index: 2, kind: input, shape index: {}]
  %s3 = inlined_call_operand.vmem [shape: f32[2,4,128], index: 3, kind: input, shape index: {}]
  %s4 = inlined_call_operand.hbm [shape: f32[2,8,128], index: 4, kind: output, shape index: {}]
  %s5 = sld [smem:[#allocation0]]
  $region53: #{_cost_matrix_pallas.1} parent=0
    _
  %s7 = ssub.s32 1, %s5
  %s8 = scalar_select 0, %s7, %s5
  $region1: #{_cost_matrix_pallas.1} parent=0
    #allocation2 [shape = 'u8[65536]{0}', space=vmem, size = 0x10000, scoped, tag = 'input window, operand 1']
    #allocation3 [shape = 's32[2]{0}', space=sflag, size = 0x8, scoped, tag = 'scoped memory for _cost_matrix_pallas.1']
    #allocation4 [shape = 's32[2]{0}', space=sflag, size = 0x8, scoped, tag = 'scoped memory for _cost_matrix_pallas.1']
    #allocation5 [shape = 'u8[8192]{0}', space=vmem, size = 0x2000, scoped, tag = 'output window, operand 0']
    %9 = vsyncpa [#allocation3], 0
    %s10 = scalar_lea.sflag [#allocation3], 1
    %11 = vsyncpa %s10, 0
    %12 = vsyncpa [#allocation4], 0
    %s13 = scalar_lea.sflag [#allocation4], 1
    %14 = vsyncpa %s13, 0
    loop: start=0, step=1, limit=4
    $region2: #{_cost_matrix_pallas.1} parent=1 // loop_pre_header
      _
    $region3: #{_cost_matrix_pallas.1} parent=1 // loop_header
      %s16 = sphi 0, %s20
      %p17 = scmp.ge.s32.totalorder %s16, 4
      %s23 = sphi 0, %s35
      %s24 = sphi 0, %s31
      %s25 = sphi 0, %s23
      %s26 = sphi 0, %s24
      %s27 = sphi 0, %s25
      %s28 = sphi 0, %s26
      %s40 = sphi 0, %s42
      %s43 = sphi 0, %s40
      %s44 = sphi 0, %s43
      %s60 = sphi 0, %s44
      %s66 = sphi 0, %s68
      %s69 = sphi 0, %s66
      %s70 = sphi 0, %s69
      %s86 = sphi 0, %s70
      %s94 = sphi 0, %s96
      %s97 = sphi 0, %s94
      %s98 = sphi 0, %s97
      %s114 = sphi 0, %s98
      %s120 = sphi 0, %s122
      %s123 = sphi 0, %s120
      %s124 = sphi 0, %s123
      %s140 = sphi 0, %s124
      %s148 = sphi 0, %s150
      %s151 = sphi 0, %s148
      %s152 = sphi 0, %s151
      %s168 = sphi 0, %s152
    $region4: #{_cost_matrix_pallas.1} parent=1 // loop_header_branch
      %19 = sbr.rel (%p17) target = $region8
    $region5: #{_cost_matrix_pallas.1} parent=1 // loop_body
      %s21 = ssub.s32 %s16, 1
      %s22 = ssub.s32 %s16, 2
      %s29 = sadd.s32 1, %s24
      %p30 = scmp.ge.s32.totalorder %s29, 1
      %s31 = scalar_select %p30, 0, %s29
      %s32 = sadd.s32 1, %s23
      %s33 = scalar_select %p30, %s32, %s23
      %p34 = scmp.ge.s32.totalorder %s33, 2
      %s35 = scalar_select %p34, 0, %s33
      %s36 = ssub.s32 %s23, %s35
      %s37 = ssub.s32 %s24, %s31
      %s38 = sor.u32 %s36, %s37
      %p39 = scmp.eq.s32.totalorder %s38, 0
      %s41 = sadd.s32 %s40, 1
      %s42 = scalar_select %p39, %s40, %s41
      %p45 = pneg %p39
      %p46 = scmp.eq.s32.totalorder %s16, 1
      %p47 = por %p45, %p46
      %p48 = scmp.ne.s32.totalorder %s40, %s43
      %p49 = scmp.eq.s32.totalorder %s16, 0
      %p50 = por %p48, %p49
      %p51 = scmp.ne.s32.totalorder %s40, %s43
      %p52 = scmp.eq.s32.totalorder %s21, 1
      %p53 = por %p51, %p52
      %p54 = scmp.ne.s32.totalorder %s43, %s44
      %p55 = scmp.eq.s32.totalorder %s21, 0
      %p56 = por %p54, %p55
      %p57 = scmp.ne.s32.totalorder %s43, %s44
      %p58 = scmp.eq.s32.totalorder %s22, 1
      %p59 = por %p57, %p58
      %p61 = scmp.ne.s32.totalorder %s44, %s60
      %p62 = scmp.eq.s32.totalorder %s22, 0
      %p63 = por %p61, %p62
      %s64 = ssub.s32 %s23, %s35
      %p65 = scmp.eq.s32.totalorder %s64, 0
      %s67 = sadd.s32 %s66, 1
      %s68 = scalar_select %p65, %s66, %s67
      %p71 = pneg %p65
      %p72 = scmp.eq.s32.totalorder %s16, 1
      %p73 = por %p71, %p72
      %p74 = scmp.ne.s32.totalorder %s66, %s69
      %p75 = scmp.eq.s32.totalorder %s16, 0
      %p76 = por %p74, %p75
      %p77 = scmp.ne.s32.totalorder %s66, %s69
      %p78 = scmp.eq.s32.totalorder %s21, 1
      %p79 = por %p77, %p78
      %p80 = scmp.ne.s32.totalorder %s69, %s70
      %p81 = scmp.eq.s32.totalorder %s21, 0
      %p82 = por %p80, %p81
      %p83 = scmp.ne.s32.totalorder %s69, %s70
      %p84 = scmp.eq.s32.totalorder %s22, 1
      %p85 = por %p83, %p84
      %p87 = scmp.ne.s32.totalorder %s70, %s86
      %p88 = scmp.eq.s32.totalorder %s22, 0
      %p89 = por %p87, %p88
      %s90 = ssub.s32 %s23, %s35
      %s91 = ssub.s32 %s24, %s31
      %s92 = sor.u32 %s90, %s91
      %p93 = scmp.eq.s32.totalorder %s92, 0
      %s95 = sadd.s32 %s94, 1
      %s96 = scalar_select %p93, %s94, %s95
      %p99 = pneg %p93
      %p100 = scmp.eq.s32.totalorder %s16, 1
      %p101 = por %p99, %p100
      %p102 = scmp.ne.s32.totalorder %s94, %s97
      %p103 = scmp.eq.s32.totalorder %s16, 0
      %p104 = por %p102, %p103
      %p105 = scmp.ne.s32.totalorder %s94, %s97
      %p106 = scmp.eq.s32.totalorder %s21, 1
      %p107 = por %p105, %p106
      %p108 = scmp.ne.s32.totalorder %s97, %s98
      %p109 = scmp.eq.s32.totalorder %s21, 0
      %p110 = por %p108, %p109
      %p111 = scmp.ne.s32.totalorder %s97, %s98
      %p112 = scmp.eq.s32.totalorder %s22, 1
      %p113 = por %p111, %p112
      %p115 = scmp.ne.s32.totalorder %s98, %s114
      %p116 = scmp.eq.s32.totalorder %s22, 0
      %p117 = por %p115, %p116
      %s118 = ssub.s32 %s23, %s35
      %p119 = scmp.eq.s32.totalorder %s118, 0
      %s121 = sadd.s32 %s120, 1
      %s122 = scalar_select %p119, %s120, %s121
      %p125 = pneg %p119
      %p126 = scmp.eq.s32.totalorder %s16, 1
      %p127 = por %p125, %p126
      %p128 = scmp.ne.s32.totalorder %s120, %s123
      %p129 = scmp.eq.s32.totalorder %s16, 0
      %p130 = por %p128, %p129
      %p131 = scmp.ne.s32.totalorder %s120, %s123
      %p132 = scmp.eq.s32.totalorder %s21, 1
      %p133 = por %p131, %p132
      %p134 = scmp.ne.s32.totalorder %s123, %s124
      %p135 = scmp.eq.s32.totalorder %s21, 0
      %p136 = por %p134, %p135
      %p137 = scmp.ne.s32.totalorder %s123, %s124
      %p138 = scmp.eq.s32.totalorder %s22, 1
      %p139 = por %p137, %p138
      %p141 = scmp.ne.s32.totalorder %s124, %s140
      %p142 = scmp.eq.s32.totalorder %s22, 0
      %p143 = por %p141, %p142
      %s144 = ssub.s32 %s23, %s35
      %s145 = ssub.s32 %s24, %s31
      %s146 = sor.u32 %s144, %s145
      %p147 = scmp.eq.s32.totalorder %s146, 0
      %s149 = sadd.s32 %s148, 1
      %s150 = scalar_select %p147, %s148, %s149
      %p153 = pneg %p147
      %p154 = scmp.eq.s32.totalorder %s16, 1
      %p155 = por %p153, %p154
      %p156 = scmp.ne.s32.totalorder %s148, %s151
      %p157 = scmp.eq.s32.totalorder %s16, 0
      %p158 = por %p156, %p157
      %p159 = scmp.ne.s32.totalorder %s148, %s151
      %p160 = scmp.eq.s32.totalorder %s21, 1
      %p161 = por %p159, %p160
      %p162 = scmp.ne.s32.totalorder %s151, %s152
      %p163 = scmp.eq.s32.totalorder %s21, 0
      %p164 = por %p162, %p163
      %p165 = scmp.ne.s32.totalorder %s151, %s152
      %p166 = scmp.eq.s32.totalorder %s22, 1
      %p167 = por %p165, %p166
      %p169 = scmp.ne.s32.totalorder %s152, %s168
      %p170 = scmp.eq.s32.totalorder %s22, 0
      %p171 = por %p169, %p170
      %p172 = scmp.le.s32.totalorder 1, %s16
      %p173 = scmp.lt.s32.totalorder %s16, 3
      %p174 = pnand %p172, %p173
      %p175 = pneg %p174
      // Predicated region
      $region9: #{_cost_matrix_pallas.1} parent=5 // pred_check
        _
      $region10: #{_cost_matrix_pallas.1} parent=5 // pred_check_branch
        %177 = sbr.rel (%p174) target = $region12
      $region11: #{_cost_matrix_pallas.1} parent=5 // pred_region
        %s178 = ssub.s32 %s16, 1
      $region12: #{_cost_matrix_pallas.1} parent=5 // pred_fallthru
        _
      %p179 = scmp.lt.s32.totalorder %s16, 2
      // Predicated region
      $region13: #{_cost_matrix_pallas.1} parent=5 // pred_check
        %p180 = pneg %p179
      $region14: #{_cost_matrix_pallas.1} parent=5 // pred_check_branch
        %182 = sbr.rel (%p180) target = $region16
      $region15: #{_cost_matrix_pallas.1} parent=5 // pred_region
        // Predicated region
        $region17: #{_cost_matrix_pallas.1} parent=15 // pred_check
          %p183 = pneg %p50
        $region18: #{_cost_matrix_pallas.1} parent=15 // pred_check_branch
          %185 = sbr.rel (%p183) target = $region20
        $region19: #{_cost_matrix_pallas.1} parent=15 // pred_region
          %p186 = scmp.lt.s32.totalorder %s23, 1
          %s187 = scalar_select %p186, %s23, 1
          %p188 = scmp.lt.s32.totalorder %s24, 0
          %s189 = scalar_select %p188, %s24, 0
          %s190 = sadd.s32 %s189, %s187
          %s191 = smul.addr %s190, 4
          %s192 = scalar_lea.vmem %s0, %s191
        $region20: #{_cost_matrix_pallas.1} parent=15 // pred_fallthru
          _
        // Predicated region
        $region21: #{_cost_matrix_pallas.1} parent=15 // pred_check
          %p193 = pneg %p76
        $region22: #{_cost_matrix_pallas.1} parent=15 // pred_check_branch
          %195 = sbr.rel (%p193) target = $region24
        $region23: #{_cost_matrix_pallas.1} parent=15 // pred_region
          %s196 = sand.u32 %s66, 1
          %s197 = scalar_lea.sflag [#allocation3], %s196
          %s198 = sand.u32 %s66, 1
          %s199 = smul.addr %s198, 64
          %s200 = scalar_lea.vmem [#allocation2], %s199
          %s202 = ssub.s32 1024, 1024
          %203 = vsyncadd %s197, %s202
          %s204 = smul.addr %s23, 16
          %s205 = smul.addr %s204, 64
          %s206 = scalar_lea.hbm %s1, %s205
          %s207 = sshll.u32 %s200, 4
          %s208 = int_to_ptr.vmem [resolvable:$true] %s207
          %213 = dma.hbm_to_vmem [thread:$0]  %s206, 1024, %s208, %s197, 64, 64, 4
        $region24: #{_cost_matrix_pallas.1} parent=15 // pred_fallthru
          _
        // Predicated region
        $region25: #{_cost_matrix_pallas.1} parent=15 // pred_check
          %p214 = pneg %p104
        $region26: #{_cost_matrix_pallas.1} parent=15 // pred_check_branch
          %216 = sbr.rel (%p214) target = $region28
        $region27: #{_cost_matrix_pallas.1} parent=15 // pred_region
          %p217 = scmp.lt.s32.totalorder %s23, 1
          %s218 = scalar_select %p217, %s23, 1
          %p219 = scmp.lt.s32.totalorder %s24, 0
          %s220 = scalar_select %p219, %s24, 0
          %s221 = sadd.s32 %s220, %s218
          %s222 = smul.addr %s221, 8
          %s223 = scalar_lea.vmem %s2, %s222
        $region28: #{_cost_matrix_pallas.1} parent=15 // pred_fallthru
          _
        // Predicated region
        $region29: #{_cost_matrix_pallas.1} parent=15 // pred_check
          %p224 = pneg %p130
        $region30: #{_cost_matrix_pallas.1} parent=15 // pred_check_branch
          %226 = sbr.rel (%p224) target = $region32
        $region31: #{_cost_matrix_pallas.1} parent=15 // pred_region
          %p227 = scmp.lt.s32.totalorder %s23, 1
          %s228 = scalar_select %p227, %s23, 1
          %s229 = smul.addr %s228, 4
          %s230 = scalar_lea.vmem %s3, %s229
        $region32: #{_cost_matrix_pallas.1} parent=15 // pred_fallthru
          _
      $region16: #{_cost_matrix_pallas.1} parent=5 // pred_fallthru
        _
      %p231 = scmp.le.s32.totalorder 1, %s16
      %p232 = scmp.lt.s32.totalorder %s16, 3
      %p233 = pnand %p231, %p232
      %p234 = pneg %p233
      // Predicated region
      $region33: #{_cost_matrix_pallas.1} parent=5 // pred_check
        _
      $region34: #{_cost_matrix_pallas.1} parent=5 // pred_check_branch
        %236 = sbr.rel (%p233) target = $region36
      $region35: #{_cost_matrix_pallas.1} parent=5 // pred_region
        %s237 = ssub.s32 %s16, 1
        %s238 = sand.u32 %s69, 1
        %s239 = scalar_lea.sflag [#allocation3], %s238
        %s240 = sand.u32 %s69, 1
        %s241 = smul.addr %s240, 64
        %s242 = scalar_lea.vmem [#allocation2], %s241
        // Predicated region
        $region37: #{_cost_matrix_pallas.1} parent=35 // pred_check
          %p243 = pneg %p82
        $region38: #{_cost_matrix_pallas.1} parent=35 // pred_check_branch
          %245 = sbr.rel (%p243) target = $region40
        $region39: #{_cost_matrix_pallas.1} parent=35 // pred_region
          %246 = dma.done %s239, 1024
        $region40: #{_cost_matrix_pallas.1} parent=35 // pred_fallthru
          _
        %p247 = scmp.lt.s32.totalorder %s25, 1
        %s248 = scalar_select %p247, %s25, 1
        %p249 = scmp.lt.s32.totalorder %s26, 0
        %s250 = scalar_select %p249, %s26, 0
        %s251 = sadd.s32 %s250, %s248
        %s252 = smul.addr %s251, 4
        %s253 = scalar_lea.vmem %s0, %s252
        %p254 = pneg %p56
        %p255 = pneg %p53
        %s256 = sand.u32 %s69, 1
        %s257 = scalar_lea.sflag [#allocation3], %s256
        %s258 = sand.u32 %s69, 1
        %s259 = smul.addr %s258, 64
        %s260 = scalar_lea.vmem [#allocation2], %s259
        %p261 = pneg %p82
        %p262 = pneg %p79
        %p263 = scmp.lt.s32.totalorder %s25, 1
        %s264 = scalar_select %p263, %s25, 1
        %p265 = scmp.lt.s32.totalorder %s26, 0
        %s266 = scalar_select %p265, %s26, 0
        %s267 = sadd.s32 %s266, %s264
        %s268 = smul.addr %s267, 8
        %s269 = scalar_lea.vmem %s2, %s268
        %p270 = pneg %p110
        %p271 = pneg %p107
        %p272 = scmp.lt.s32.totalorder %s25, 1
        %s273 = scalar_select %p272, %s25, 1
        %s274 = smul.addr %s273, 4
        %s275 = scalar_lea.vmem %s3, %s274
        %p276 = pneg %p136
        %p277 = pneg %p133
        %p278 = pneg %p164
        %p279 = pneg %p161
        %s280 = sand.u32 %s151, 1
        %s281 = scalar_lea.sflag [#allocation4], %s280
        %s282 = sand.u32 %s151, 1
        %s283 = smul.addr %s282, 8
        %s284 = scalar_lea.vmem [#allocation5], %s283
        %p285 = scmp.lt.s32.totalorder %s25, 1
        %s286 = scalar_select %p285, %s25, 1
        %p287 = scmp.lt.s32.totalorder %s26, 0
        %s288 = scalar_select %p287, %s26, 0
        %s289 = sadd.s32 %s288, %s286
        %s290 = smul.addr %s289, 4
        %s291 = scalar_lea.vmem %s0, %s290
        %p292 = scmp.lt.s32.totalorder %s25, 1
        %s293 = scalar_select %p292, %s25, 1
        %p294 = scmp.lt.s32.totalorder %s26, 0
        %s295 = scalar_select %p294, %s26, 0
        %s296 = sadd.s32 %s295, %s293
        %s297 = smul.addr %s296, 8
        %s298 = scalar_lea.vmem %s2, %s297
        %p299 = scmp.lt.s32.totalorder %s25, 1
        %s300 = scalar_select %p299, %s25, 1
        %s301 = smul.addr %s300, 4
        %s302 = scalar_lea.vmem %s3, %s301
        %v304 = vld [vmem:[%s291] sm:$0xf]
        %v305 = vld [vmem:[%s242] sm:$0xf]
        %v306 = vld [vmem:[%s242 + $0x4] sm:$0xf]
        %v307 = vld [vmem:[%s242 + $0x8] sm:$0xf]
        %v308 = vld [vmem:[%s242 + $0xc] sm:$0xf]
        %v309 = vld [vmem:[%s242 + $0x10] sm:$0xf]
        %v310 = vld [vmem:[%s242 + $0x14] sm:$0xf]
        %v311 = vld [vmem:[%s242 + $0x18] sm:$0xf]
        %v312 = vld [vmem:[%s242 + $0x1c] sm:$0xf]
        %v313 = vld [vmem:[%s242 + $0x20] sm:$0xf]
        %v314 = vld [vmem:[%s242 + $0x24] sm:$0xf]
        %v315 = vld [vmem:[%s242 + $0x28] sm:$0xf]
        %v316 = vld [vmem:[%s242 + $0x2c] sm:$0xf]
        %v317 = vld [vmem:[%s242 + $0x30] sm:$0xf]
        %v318 = vld [vmem:[%s242 + $0x34] sm:$0xf]
        %v319 = vld [vmem:[%s242 + $0x38] sm:$0xf]
        %v320 = vld [vmem:[%s242 + $0x3c] sm:$0xf]
        %v337 = vunpack.c.l.b16 %v305
        %v338 = vunpack.c.l.b16 %v306
        %v339 = vunpack.c.l.b16 %v307
        %v340 = vunpack.c.l.b16 %v308
        %v341 = vunpack.c.l.b16 %v309
        %v342 = vunpack.c.l.b16 %v310
        %v343 = vunpack.c.l.b16 %v311
        %v344 = vunpack.c.l.b16 %v312
        %v345 = vunpack.c.l.b16 %v313
        %v346 = vunpack.c.l.b16 %v314
        %v347 = vunpack.c.l.b16 %v315
        %v348 = vunpack.c.l.b16 %v316
        %v349 = vunpack.c.l.b16 %v317
        %v350 = vunpack.c.l.b16 %v318
        %v351 = vunpack.c.l.b16 %v319
        %v352 = vunpack.c.l.b16 %v320
        %v353 = vpack.c.b16 %v338, %v337
        %v354 = vpack.c.b16 %v340, %v339
        %v355 = vpack.c.b16 %v342, %v341
        %v356 = vpack.c.b16 %v344, %v343
        %v357 = vpack.c.b16 %v346, %v345
        %v358 = vpack.c.b16 %v348, %v347
        %v359 = vpack.c.b16 %v350, %v349
        %v360 = vpack.c.b16 %v352, %v351
        %369 = vmatprep.subr.bf16.mxu0 0
        %370 = vmatpush1.bf16.msra.mxu0 %v353
        %371 = vmatprep.subr.bf16.mxu0 0
        %372 = vmatpush1.bf16.msra.mxu0 %v354
        %373 = vmatprep.subr.bf16.mxu0 0
        %374 = vmatpush1.bf16.msra.mxu0 %v355
        %375 = vmatprep.subr.bf16.mxu0 0
        %376 = vmatpush1.bf16.msra.mxu0 %v356
        %377 = vmatprep.subr.bf16.mxu0 0
        %378 = vmatpush1.bf16.msra.mxu0 %v357
        %379 = vmatprep.subr.bf16.mxu0 0
        %380 = vmatpush1.bf16.msra.mxu0 %v358
        %381 = vmatprep.subr.bf16.mxu0 0
        %382 = vmatpush1.bf16.msra.mxu0 %v359
        %383 = vmatprep.subr.bf16.mxu0 0
        %384 = vmatpush1.bf16.msra.mxu0 %v360
        %385 = vmatprep.subr.bf16.mxu0 0
        %386 = vmatpush1.bf16.msra.mxu0 0
        %387 = vmatprep.subr.bf16.mxu0 0
        %388 = vmatpush1.bf16.msra.mxu0 0
        %389 = vmatprep.subr.bf16.mxu0 0
        %390 = vmatpush1.bf16.msra.mxu0 0
        %391 = vmatprep.subr.bf16.mxu0 0
        %392 = vmatpush1.bf16.msra.mxu0 0
        %393 = vmatprep.subr.bf16.mxu0 0
        %394 = vmatpush1.bf16.msra.mxu0 0
        %395 = vmatprep.subr.bf16.mxu0 0
        %396 = vmatpush1.bf16.msra.mxu0 0
        %397 = vmatprep.subr.bf16.mxu0 0
        %398 = vmatpush1.bf16.msra.mxu0 0
        %399 = vmatprep.subr.bf16.mxu0 0
        %400 = vmatpush1.bf16.msra.mxu0 0
        %401 = vmatprep.mubr.bf16.mxu0 0
        %402 = vmatmul.mubr.bf16.gmra.mrb[0].mxu0 %v304
        %v403 = vpop.f32.mrb[0].mxu0
        %v404 = vadd.f32 0.0, %v403
        %v405 = vpop.f32.mrb[0].mxu0
        %v406 = vpop.f32.mrb[0].mxu0
        %v407 = vpop.f32.mrb[0].mxu0
        %408 = vdwg.mxu0
        %v409 = vmul.f32 %v404, 0.5
        %v410 = vtanh.pop %v409
        %v411 = vmul.f32 %v410, 0.5
        %v412 = vadd.f32 %v411, 0.5
        %v413 = vld [vmem:[%s298] sm:$0xff]
        %v414 = vld [vmem:[%s302] sm:$0xf]
        %416 = vset.pattern.permute.xlu0 0
        %417 = vperm.xlu0 %416, %v413
        %v418 = vpop.permute.xlu0 %417
        %v420 = vlaneseq
        %v421 = vshrl.u32 %v420, 7
        %v422 = vsub.s32 0, %v421
        %v423 = vrot.slane %v414, %v422
        %v424 = vsub.f32 %v418, %v423
        %v425 = vand.u32 2147483647, %v424
        %426 = vset.pattern.permute.xlu0 1
        %427 = vperm.xlu0 %426, %v413
        %v428 = vpop.permute.xlu0 %427
        %v430 = vlaneseq
        %v431 = vshrl.u32 %v430, 7
        %v432 = vsub.s32 1, %v431
        %v433 = vrot.slane %v414, %v432
        %v434 = vsub.f32 %v428, %v433
        %v435 = vand.u32 2147483647, %v434
        %v436 = vadd.f32 %v425, %v435
        %437 = vset.pattern.permute.xlu0 2
        %438 = vperm.xlu0 %437, %v413
        %v439 = vpop.permute.xlu0 %438
        %v441 = vlaneseq
        %v442 = vshrl.u32 %v441, 7
        %v443 = vsub.s32 2, %v442
        %v444 = vrot.slane %v414, %v443
        %v445 = vsub.f32 %v439, %v444
        %v446 = vand.u32 2147483647, %v445
        %v447 = vadd.f32 %v436, %v446
        %448 = vset.pattern.permute.xlu0 3
        %449 = vperm.xlu0 %448, %v413
        %v450 = vpop.permute.xlu0 %449
        %v452 = vlaneseq
        %v453 = vshrl.u32 %v452, 7
        %v454 = vsub.s32 3, %v453
        %v455 = vrot.slane %v414, %v454
        %v456 = vsub.f32 %v450, %v455
        %v457 = vand.u32 2147483647, %v456
        %v458 = vadd.f32 %v447, %v457
        %v459 = vmul.f32 %v413, 0.5
        %461 = vrot.lane.b32.xlu0 %v459, 126
        %v462 = vpop.permute.xlu0 %461
        %v464 = vsub.f32 %v413, %v462
        %v465 = vadd.f32 %v413, %v462
        %v466 = vmul.f32 %v414, 0.5
        %v468 = vrot.slane %v466, 2
        %v470 = vsub.f32 %v414, %v468
        %v471 = vadd.f32 %v414, %v468
        %v472 = vsub.f32 %v465, %v464
        %474 = vrot.lane.b32.xlu0 %v472, 127
        %v475 = vpop.permute.xlu0 %474
        %v477 = vmul.f32 %v472, %v475
        %v478 = vsub.f32 %v471, %v470
        %v480 = vrot.slane %v478, 1
        %v482 = vmul.f32 %v478, %v480
        %484 = vset.pattern.permute.xlu0 0
        %485 = vperm.xlu0 %484, %v465
        %v486 = vpop.permute.xlu0 %485
        %v488 = vlaneseq
        %v489 = vshrl.u32 %v488, 7
        %v490 = vsub.s32 0, %v489
        %v491 = vrot.slane %v471, %v490
        %v492 = vmin.f32 %v486, %v491
        %494 = vset.pattern.permute.xlu0 0
        %495 = vperm.xlu0 %494, %v464
        %v496 = vpop.permute.xlu0 %495
        %v498 = vlaneseq
        %v499 = vshrl.u32 %v498, 7
        %v500 = vsub.s32 0, %v499
        %v501 = vrot.slane %v470, %v500
        %v502 = vmax.f32 %v496, %v501
        %v503 = vsub.f32 %v492, %v502
        %v504 = vmax.f32 %v503, 0.0
        %505 = vset.pattern.permute.xlu0 1
        %506 = vperm.xlu0 %505, %v465
        %v507 = vpop.permute.xlu0 %506
        %v509 = vlaneseq
        %v510 = vshrl.u32 %v509, 7
        %v511 = vsub.s32 1, %v510
        %v512 = vrot.slane %v471, %v511
        %v513 = vmin.f32 %v507, %v512
        %514 = vset.pattern.permute.xlu0 1
        %515 = vperm.xlu0 %514, %v464
        %v516 = vpop.permute.xlu0 %515
        %v518 = vlaneseq
        %v519 = vshrl.u32 %v518, 7
        %v520 = vsub.s32 1, %v519
        %v521 = vrot.slane %v470, %v520
        %v522 = vmax.f32 %v516, %v521
        %v523 = vsub.f32 %v513, %v522
        %v524 = vmax.f32 %v523, 0.0
        %v525 = vmul.f32 %v504, %v524
        %527 = vset.pattern.permute.xlu0 0
        %528 = vperm.xlu0 %527, %v477
        %v529 = vpop.permute.xlu0 %528
        %v531 = vlaneseq
        %v532 = vshrl.u32 %v531, 7
        %v533 = vsub.s32 0, %v532
        %v534 = vrot.slane %v482, %v533
        %v535 = vadd.f32 %v529, %v534
        %v536 = vsub.f32 %v535, %v525
        %v537 = vmax.f32 %v486, %v491
        %v538 = vmin.f32 %v496, %v501
        %v539 = vsub.f32 %v537, %v538
        %v540 = vmax.f32 %v507, %v512
        %v541 = vmin.f32 %v516, %v521
        %v542 = vsub.f32 %v540, %v541
        %v543 = vmul.f32 %v539, %v542
        %v544 = vadd.f32 %v536, 1e-07
        %v545 = vrcp.pop %v544
        %v546 = vmul.f32 %v525, %v545
        %v547 = vsub.f32 %v543, %v536
        %v548 = vadd.f32 %v543, 1e-07
        %v549 = vrcp.pop %v548
        %v550 = vmul.f32 %v547, %v549
        %v551 = vsub.f32 %v546, %v550
        %v552 = vsub.f32 %v458, %v412
        %v553 = vsub.f32 %v552, %v551
        %554 = vst [vmem:[%s284] sm:$0xff] %v553
        %s555 = sand.u32 %s151, 1
        %s556 = scalar_lea.sflag [#allocation4], %s555
        %s557 = sand.u32 %s151, 1
        %s558 = smul.addr %s557, 8
        %s559 = scalar_lea.vmem [#allocation5], %s558
        // Predicated region
        $region41: #{_cost_matrix_pallas.1} parent=35 // pred_check
          %p560 = pneg %p161
        $region42: #{_cost_matrix_pallas.1} parent=35 // pred_check_branch
          %562 = sbr.rel (%p560) target = $region44
        $region43: #{_cost_matrix_pallas.1} parent=35 // pred_region
          %s564 = ssub.s32 128, 128
          %565 = vsyncadd %s556, %s564
          %s566 = sadd.s32 %s26, %s25
          %s567 = smul.addr %s566, 128
          %s568 = scalar_lea.hbm %s4, %s567
          %s570 = sshll.u32 %s559, 4
          %s571 = int_to_ptr.vmem [resolvable:$true] %s570
          %573 = dma.vmem_to_hbm [thread:$0]  %s571, 128, %s568, %s556
        $region44: #{_cost_matrix_pallas.1} parent=35 // pred_fallthru
          _
      $region36: #{_cost_matrix_pallas.1} parent=5 // pred_fallthru
        _
      %p574 = scmp.le.s32.totalorder 2, %s16
      // Predicated region
      $region45: #{_cost_matrix_pallas.1} parent=5 // pred_check
        %p575 = pneg %p574
      $region46: #{_cost_matrix_pallas.1} parent=5 // pred_check_branch
        %577 = sbr.rel (%p575) target = $region48
      $region47: #{_cost_matrix_pallas.1} parent=5 // pred_region
        %s578 = ssub.s32 %s16, 2
        // Predicated region
        $region49: #{_cost_matrix_pallas.1} parent=47 // pred_check
          %p579 = pneg %p167
        $region50: #{_cost_matrix_pallas.1} parent=47 // pred_check_branch
          %581 = sbr.rel (%p579) target = $region52
        $region51: #{_cost_matrix_pallas.1} parent=47 // pred_region
          %s582 = sand.u32 %s152, 1
          %s583 = scalar_lea.sflag [#allocation4], %s582
          %s584 = sand.u32 %s152, 1
          %s585 = smul.addr %s584, 8
          %s586 = scalar_lea.vmem [#allocation5], %s585
          %587 = dma.done %s583, 128
        $region52: #{_cost_matrix_pallas.1} parent=47 // pred_fallthru
          _
      $region48: #{_cost_matrix_pallas.1} parent=5 // pred_fallthru
        _
    $region6: #{_cost_matrix_pallas.1} parent=1 // loop_footer
      %s20 = sadd.s32 1, %s16
    $region7: #{_cost_matrix_pallas.1} parent=1 // loop_footer_branch
      %15 = sbr.rel target = $region3
    $region8: #{_cost_matrix_pallas.1} parent=1 // loop_exit
      _
    %588 = vsyncpa [#allocation3], 1
    %s589 = scalar_lea.sflag [#allocation3], 1
    %590 = vsyncpa %s589, 1
    %591 = vsyncpa [#allocation4], 1
    %s592 = scalar_lea.sflag [#allocation4], 1
    %593 = vsyncpa %s592, 1

</llo_original>
